<compile_context>
chip_gen: v7x
topology: tpu7x:2x2x1
jax: 0.10.0
libtpu: 0.0.40
codegen_flags: <defaults>
</compile_context>

<pallas_src>
import functools

import jax
import jax.numpy as jnp
from jax import lax
from jax.experimental import pallas as pl
from jax.experimental.pallas import tpu as pltpu


_LANE = 128       # f32 lane width
_SUBLANE = 8      # f32 sublane count
_FUSED_SLAB_MAX_BYTES = 8 * 1024 * 1024       # per-batch (C,HW) f32 slab for fused path
_TILED_BLOCK_BUDGET_BYTES = 24 * 1024 * 1024  # ~four f32 copies of a (C, tile_hw) block
_MAX_TILE_HW = 2048                           # lanes per HW tile in the tiled path


def _round_up(v, m):
    return ((v + m - 1) // m) * m


def _vmem_limit_bytes(block_bytes):
    # Generous-but-bounded scoped-VMEM request: enough for the double-buffered
    # blocks plus margin, capped below v7x's 64 MiB physical VMEM.
    return int(min(max(block_bytes + (2 << 20), 32 * 1024 * 1024),
                   60 * 1024 * 1024))


def _pad_x(x_nchw, b, c, hw, c_pad, hw_pad):
    x_flat = x_nchw.reshape(b, c, hw).astype(jnp.float32)
    if c_pad != c or hw_pad != hw:
        x_flat = jnp.pad(x_flat, ((0, 0), (0, c_pad - c), (0, hw_pad - hw)))
    return x_flat


# --------------------------------------------------------------------------
# Fused single-slab kernel (whole (C_pad, HW_pad) per batch element in VMEM).
# --------------------------------------------------------------------------
def _awca_fused_kernel(hw_valid, x_ref, wconv_ref, w1_ref, w2_ref, o_ref):
    # x_ref: (1, C, HWp)  wconv/w1/w2: (C, 1)  o_ref: (1, C, HWp)
    x = x_ref[0]                                                    # (C, HWp)
    hw_p = x.shape[-1]

    # 1x1 conv logits on the VPU + sublane reduce (no M=1 MXU matmul).
    logits = jnp.sum(wconv_ref[...] * x, axis=0, keepdims=True)     # (1, HWp)

    if hw_valid != hw_p:  # static: lane padding present -> mask it out
        lane = lax.broadcasted_iota(jnp.int32, (1, hw_p), 1)
        logits = jnp.where(lane < hw_valid, logits, -jnp.inf)

    # Softmax over spatial positions (dim=2 in the PyTorch code).
    m = jnp.max(logits, axis=-1, keepdims=True)
    e = jnp.exp(logits - m)                                         # 0 at padded lanes
    p = e * pl.reciprocal(jnp.sum(e, axis=-1, keepdims=True), approx=True)

    # y[c] = sum_hw x[c, hw] * p[hw]   (the (1,C,HW)@(HW,1) matmul, lane reduce)
    y = jnp.sum(x * p, axis=-1, keepdims=True)                      # (C, 1)

    # fc: Linear(C->1) -> LeakyReLU(0.2) -> Linear(1->C) -> Sigmoid
    s = jnp.sum(w1_ref[...] * y, axis=0, keepdims=True)             # (1, 1)
    s = jnp.where(s >= 0.0, s, 0.2 * s)
    z = jax.nn.sigmoid(w2_ref[...] * s)                             # (C, 1)

    o_ref[0] = x * z                                                # broadcast over HW


# --------------------------------------------------------------------------
# Tiled two-pass path (flash-style online softmax over HW tiles).
# --------------------------------------------------------------------------
def _awca_stats_kernel(hw_valid, x_ref, wconv_ref, w1_ref, w2_ref, z_ref,
                       m_sc, l_sc, acc_sc):
    # Grid: (B, n_tiles) with the HW-tile axis "arbitrary" (reduction).
    t = pl.program_id(1)

    @pl.when(t == 0)
    def _():
        m_sc[...] = jnp.full_like(m_sc, -jnp.inf)
        l_sc[...] = jnp.zeros_like(l_sc)
        acc_sc[...] = jnp.zeros_like(acc_sc)

    x = x_ref[0]                                                    # (C, TILE)
    tile_hw = x.shape[-1]

    logits = jnp.sum(wconv_ref[...] * x, axis=0, keepdims=True)     # (1, TILE)
    lane = lax.broadcasted_iota(jnp.int32, (1, tile_hw), 1)
    valid = (lane + t * tile_hw) < hw_valid
    logits = jnp.where(valid, logits, -jnp.inf)

    m_prev = m_sc[...]
    m_new = jnp.maximum(m_prev, jnp.max(logits, axis=-1, keepdims=True))
    alpha = jnp.exp(m_prev - m_new)                                 # (1, 1)
    e = jnp.exp(logits - m_new)                                     # 0 at padded lanes
    l_sc[...] = alpha * l_sc[...] + jnp.sum(e, axis=-1, keepdims=True)
    acc_sc[...] = alpha * acc_sc[...] + jnp.sum(x * e, axis=-1, keepdims=True)
    m_sc[...] = m_new

    @pl.when(t == pl.num_programs(1) - 1)
    def _():
        y = acc_sc[...] * pl.reciprocal(l_sc[...], approx=True)     # (C, 1)
        s = jnp.sum(w1_ref[...] * y, axis=0, keepdims=True)         # (1, 1)
        s = jnp.where(s >= 0.0, s, 0.2 * s)                         # LeakyReLU(0.2)
        z_ref[0] = jax.nn.sigmoid(w2_ref[...] * s)                  # (C, 1)


def _awca_apply_kernel(x_ref, z_ref, o_ref):
    # x_ref: (1, C, TILE)  z_ref: (1, C, 1)  o_ref: (1, C, TILE)
    o_ref[0] = x_ref[0] * z_ref[0]


# --------------------------------------------------------------------------
# Wrapper
# --------------------------------------------------------------------------
def awca_forward(x_nchw, w_conv, w_fc1, w_fc2,
                 fused_slab_max_bytes=_FUSED_SLAB_MAX_BYTES,
                 max_tile_hw=_MAX_TILE_HW):
    """x_nchw: (B, C, H, W). Weights follow PyTorch shapes:
       w_conv (1, C, 1, 1), w_fc1 (1, C), w_fc2 (C, 1)."""
    b, c, h, w = x_nchw.shape
    hw = h * w
    c_pad = _round_up(c, _SUBLANE)
    hw_lane = _round_up(hw, _LANE)

    # Channel-vector parameters laid out as (C_pad, 1) columns (sublanes).
    def _col(p):
        return jnp.pad(p.reshape(c, 1).astype(jnp.float32),
                       ((0, c_pad - c), (0, 0)))

    wconv = _col(w_conv)
    w1 = _col(w_fc1)
    w2 = _col(w_fc2)

    slab_bytes = c_pad * hw_lane * 4

    if slab_bytes <= fused_slab_max_bytes:
        # ---- fused single-slab path --------------------------------------
        hw_pad = hw_lane
        x_flat = _pad_x(x_nchw, b, c, hw, c_pad, hw_pad)
        out = pl.pallas_call(
            functools.partial(_awca_fused_kernel, hw),
            out_shape=jax.ShapeDtypeStruct((b, c_pad, hw_pad), jnp.float32),
            grid_spec=pltpu.PrefetchScalarGridSpec(
                num_scalar_prefetch=0,
                grid=(b,),
                in_specs=[
                    pl.BlockSpec((1, c_pad, hw_pad), lambda i: (i, 0, 0)),
                    pl.BlockSpec((c_pad, 1), lambda i: (0, 0)),
                    pl.BlockSpec((c_pad, 1), lambda i: (0, 0)),
                    pl.BlockSpec((c_pad, 1), lambda i: (0, 0)),
                ],
                out_specs=pl.BlockSpec((1, c_pad, hw_pad), lambda i: (i, 0, 0)),
            ),
            input_output_aliases={0: 0},
            compiler_params=pltpu.CompilerParams(
                dimension_semantics=("parallel",),
                vmem_limit_bytes=_vmem_limit_bytes(4 * slab_bytes)),
        )(x_flat, wconv, w1, w2)
    else:
        # ---- tiled two-pass path (scales to any C*HW) --------------------
        tile_budget = max(_LANE,
                          (_TILED_BLOCK_BUDGET_BYTES // (16 * c_pad))
                          // _LANE * _LANE)
        tile_hw = min(hw_lane, max_tile_hw, tile_budget)
        hw_pad = _round_up(hw, tile_hw)
        n_tiles = hw_pad // tile_hw
        x_flat = _pad_x(x_nchw, b, c, hw, c_pad, hw_pad)
        vmem_limit = _vmem_limit_bytes(8 * 4 * c_pad * tile_hw)

        # Pass 1: per-batch channel gate z via online softmax over HW tiles.
        z = pl.pallas_call(
            functools.partial(_awca_stats_kernel, hw),
            out_shape=jax.ShapeDtypeStruct((b, c_pad, 1), jnp.float32),
            grid_spec=pltpu.PrefetchScalarGridSpec(
                num_scalar_prefetch=0,
                grid=(b, n_tiles),
                in_specs=[
                    pl.BlockSpec((1, c_pad, tile_hw), lambda i, t: (i, 0, t)),
                    pl.BlockSpec((c_pad, 1), lambda i, t: (0, 0)),
                    pl.BlockSpec((c_pad, 1), lambda i, t: (0, 0)),
                    pl.BlockSpec((c_pad, 1), lambda i, t: (0, 0)),
                ],
                out_specs=pl.BlockSpec((1, c_pad, 1), lambda i, t: (i, 0, 0)),
                scratch_shapes=[
                    pltpu.VMEM((1, 1), jnp.float32),      # running max
                    pltpu.VMEM((1, 1), jnp.float32),      # running denom
                    pltpu.VMEM((c_pad, 1), jnp.float32),  # running weighted sum
                ],
            ),
            compiler_params=pltpu.CompilerParams(
                dimension_semantics=("parallel", "arbitrary"),
                vmem_limit_bytes=vmem_limit),
        )(x_flat, wconv, w1, w2)

        # Pass 2: channel re-weighting, fully parallel, output aliased onto x.
        out = pl.pallas_call(
            _awca_apply_kernel,
            out_shape=jax.ShapeDtypeStruct((b, c_pad, hw_pad), jnp.float32),
            grid_spec=pltpu.PrefetchScalarGridSpec(
                num_scalar_prefetch=0,
                grid=(b, n_tiles),
                in_specs=[
                    pl.BlockSpec((1, c_pad, tile_hw), lambda i, t: (i, 0, t)),
                    pl.BlockSpec((1, c_pad, 1), lambda i, t: (i, 0, 0)),
                ],
                out_specs=pl.BlockSpec((1, c_pad, tile_hw), lambda i, t: (i, 0, t)),
            ),
            input_output_aliases={0: 0},
            compiler_params=pltpu.CompilerParams(
                dimension_semantics=("parallel", "parallel"),
                vmem_limit_bytes=vmem_limit),
        )(x_flat, z)

    out = out[:, :c, :hw]
    return out.reshape(b, c, h, w)


# --------------------------------------------------------------------------
# Pure-JAX reference mirroring the PyTorch forward, for sanity checks.
# --------------------------------------------------------------------------
def _reference(x, w_conv, w_fc1, w_fc2):
    b, c, h, w = x.shape
    input_x = x.reshape(b, c, h * w)                             # (B, C, HW)
    mask = jnp.einsum("oc,bchw->bohw", w_conv.reshape(1, c), x)  # 1x1 conv
    mask = mask.reshape(b, 1, h * w)
    mask = jax.nn.softmax(mask, axis=2)                          # (B, 1, HW)
    y = jnp.einsum("bch,bh->bc", input_x, mask[:, 0, :])         # (B, C)
    t = y @ w_fc1.T                                              # (B, 1)
    t = jnp.where(t >= 0, t, 0.2 * t)
    z = jax.nn.sigmoid(t @ w_fc2.T)                              # (B, C)
    return x * z[:, :, None, None]


if __name__ == "__main__":
    key = jax.random.PRNGKey(0)
    k0, k1_, k2_ = jax.random.split(key, 3)

    def init_params(c_, key_):
        kc, ka, kb = jax.random.split(key_, 3)
        w_conv = jax.random.normal(kc, (1, c_, 1, 1), dtype=jnp.float32) * 0.1
        w_fc1 = jax.random.normal(ka, (1, c_), dtype=jnp.float32) * 0.1
        w_fc2 = jax.random.normal(kb, (c_, 1), dtype=jnp.float32) * 0.1
        return w_conv, w_fc1, w_fc2

    # Case 1: small aligned-ish shape (fused single-slab path).
    B, C, H, W = 2, 4, 16, 16
    kx, kw = jax.random.split(k0)
    x = jax.random.normal(kx, (B, C, H, W), dtype=jnp.float32)
    w_conv, w_fc1, w_fc2 = init_params(C, kw)
    out = jax.block_until_ready(awca_forward(x, w_conv, w_fc1, w_fc2))
    ref = _reference(x, w_conv, w_fc1, w_fc2)
    assert out.shape == (B, C, H, W)
    assert jnp.allclose(out, ref, atol=1e-3, rtol=1e-3)

    # Case 2: module-default channel=31 with unaligned spatial size
    # (exercises C-sublane and HW-lane padding + the softmax mask).
    B, C, H, W = 2, 31, 7, 9
    kx, kw = jax.random.split(k1_)
    x = jax.random.normal(kx, (B, C, H, W), dtype=jnp.float32)
    w_conv, w_fc1, w_fc2 = init_params(C, kw)
    out = jax.block_until_ready(awca_forward(x, w_conv, w_fc1, w_fc2))
    ref = _reference(x, w_conv, w_fc1, w_fc2)
    assert jnp.allclose(out, ref, atol=1e-3, rtol=1e-3)

    # Case 3: force the tiled two-pass (online-softmax) path at a small size
    # so the large-feature-map code path is also compiled and checked.
    B, C, H, W = 2, 31, 16, 24   # HW = 384 -> 3 tiles of 128 lanes
    kx, kw = jax.random.split(k2_)
    x = jax.random.normal(kx, (B, C, H, W), dtype=jnp.float32)
    w_conv, w_fc1, w_fc2 = init_params(C, kw)
    out = jax.block_until_ready(
        awca_forward(x, w_conv, w_fc1, w_fc2,
                     fused_slab_max_bytes=0, max_tile_hw=128))
    ref = _reference(x, w_conv, w_fc1, w_fc2)
    assert jnp.allclose(out, ref, atol=1e-3, rtol=1e-3)

    print("KERNEL_OK")
</pallas_src>

<mosaic_0001>
module attributes {stable_mosaic.version = 11 : i64} {
  func.func @_awca_fused_kernel(%arg0: i32, %arg1: memref<1x8x256xf32, #tpu.memory_space<vmem>>, %arg2: memref<8x1xf32, #tpu.memory_space<vmem>>, %arg3: memref<8x1xf32, #tpu.memory_space<vmem>>, %arg4: memref<8x1xf32, #tpu.memory_space<vmem>>, %arg5: memref<1x8x256xf32, #tpu.memory_space<vmem>>) attributes {dimension_semantics = [#tpu.dimension_semantics<parallel>], iteration_bounds = array<i64: 2>, scalar_prefetch = 0 : i64, scratch_operands = 0 : i64, tpu.core_type = #tpu.core_type<tc>, window_params = [{transform_indices = @transform_0, window_bounds = array<i64: 1, 8, 256>}, {pipeline_mode = #tpu.pipeline_mode<synchronous>, transform_indices = @transform_1, window_bounds = array<i64: 8, 1>}, {pipeline_mode = #tpu.pipeline_mode<synchronous>, transform_indices = @transform_2, window_bounds = array<i64: 8, 1>}, {pipeline_mode = #tpu.pipeline_mode<synchronous>, transform_indices = @transform_3, window_bounds = array<i64: 8, 1>}, {transform_indices = @transform_4, window_bounds = array<i64: 1, 8, 256>}]} {
    %c0 = arith.constant 0 : index
    %c0_0 = arith.constant 0 : index
    %c0_1 = arith.constant 0 : index
    %0 = vector.load %arg1[%c0, %c0_0, %c0_1] : memref<1x8x256xf32, #tpu.memory_space<vmem>>, vector<1x8x256xf32>
    %1 = vector.shape_cast %0 : vector<1x8x256xf32> to vector<8x256xf32>
    %c0_2 = arith.constant 0 : index
    %c0_3 = arith.constant 0 : index
    %2 = vector.load %arg2[%c0_2, %c0_3] : memref<8x1xf32, #tpu.memory_space<vmem>>, vector<8x1xf32>
    %3 = vector.broadcast %2 : vector<8x1xf32> to vector<8x256xf32>
    %4 = arith.mulf %3, %1 : vector<8x256xf32>
    %cst = arith.constant dense<0.000000e+00> : vector<256xf32>
    %5 = vector.multi_reduction <add>, %4, %cst [0] : vector<8x256xf32> to vector<256xf32>
    %6 = vector.shape_cast %5 : vector<256xf32> to vector<1x256xf32>
    %cst_4 = arith.constant dense<0xFF800000> : vector<1xf32>
    %7 = vector.multi_reduction <maximumf>, %6, %cst_4 [1] : vector<1x256xf32> to vector<1xf32>
    %8 = vector.shape_cast %7 : vector<1xf32> to vector<1x1xf32>
    %9 = vector.broadcast %8 : vector<1x1xf32> to vector<1x256xf32>
    %10 = arith.subf %6, %9 : vector<1x256xf32>
    %11 = math.exp %10 : vector<1x256xf32>
    %cst_5 = arith.constant dense<0.000000e+00> : vector<1xf32>
    %12 = vector.multi_reduction <add>, %11, %cst_5 [1] : vector<1x256xf32> to vector<1xf32>
    %13 = vector.shape_cast %12 : vector<1xf32> to vector<1x1xf32>
    %14 = tpu.reciprocal %13 {approx = true} : vector<1x1xf32> -> vector<1x1xf32>
    %15 = vector.broadcast %14 : vector<1x1xf32> to vector<1x256xf32>
    %16 = arith.mulf %11, %15 : vector<1x256xf32>
    %17 = vector.broadcast %16 : vector<1x256xf32> to vector<8x256xf32>
    %18 = arith.mulf %1, %17 : vector<8x256xf32>
    %cst_6 = arith.constant dense<0.000000e+00> : vector<8xf32>
    %19 = vector.multi_reduction <add>, %18, %cst_6 [1] : vector<8x256xf32> to vector<8xf32>
    %20 = vector.shape_cast %19 : vector<8xf32> to vector<8x1xf32>
    %c0_7 = arith.constant 0 : index
    %c0_8 = arith.constant 0 : index
    %21 = vector.load %arg3[%c0_7, %c0_8] : memref<8x1xf32, #tpu.memory_space<vmem>>, vector<8x1xf32>
    %22 = arith.mulf %21, %20 : vector<8x1xf32>
    %cst_9 = arith.constant dense<0.000000e+00> : vector<1xf32>
    %23 = vector.multi_reduction <add>, %22, %cst_9 [0] : vector<8x1xf32> to vector<1xf32>
    %24 = vector.shape_cast %23 : vector<1xf32> to vector<1x1xf32>
    %cst_10 = arith.constant 0.000000e+00 : f32
    %25 = vector.broadcast %cst_10 : f32 to vector<1x1xf32>
    %26 = arith.cmpf oge, %24, %25 : vector<1x1xf32>
    %cst_11 = arith.constant 2.000000e-01 : f32
    %27 = vector.broadcast %cst_11 : f32 to vector<1x1xf32>
    %28 = arith.mulf %27, %24 : vector<1x1xf32>
    %29 = arith.select %26, %24, %28 : vector<1x1xi1>, vector<1x1xf32>
    %c0_12 = arith.constant 0 : index
    %c0_13 = arith.constant 0 : index
    %30 = vector.load %arg4[%c0_12, %c0_13] : memref<8x1xf32, #tpu.memory_space<vmem>>, vector<8x1xf32>
    %31 = vector.broadcast %29 : vector<1x1xf32> to vector<8x1xf32>
    %32 = arith.mulf %30, %31 : vector<8x1xf32>
    %33 = arith.negf %32 : vector<8x1xf32>
    %34 = math.exp %33 : vector<8x1xf32>
    %cst_14 = arith.constant 1.000000e+00 : f32
    %35 = vector.broadcast %cst_14 : f32 to vector<8x1xf32>
    %36 = arith.addf %35, %34 : vector<8x1xf32>
    %37 = arith.divf %35, %36 : vector<8x1xf32>
    %38 = vector.broadcast %37 : vector<8x1xf32> to vector<8x256xf32>
    %39 = arith.mulf %1, %38 : vector<8x256xf32>
    %c0_15 = arith.constant 0 : index
    %c0_16 = arith.constant 0 : index
    %c0_17 = arith.constant 0 : index
    %40 = vector.load %arg5[%c0_15, %c0_16, %c0_17] : memref<1x8x256xf32, #tpu.memory_space<vmem>>, vector<1x8x256xf32>
    %41 = vector.shape_cast %40 : vector<1x8x256xf32> to vector<8x256xf32>
    %42 = vector.shape_cast %39 : vector<8x256xf32> to vector<1x8x256xf32>
    tpu.vector_store %arg5[%c0_15, %c0_16, %c0_17], %42 {strides = array<i32>} : memref<1x8x256xf32, #tpu.memory_space<vmem>>, vector<1x8x256xf32>,
    return
  }
  func.func @transform_0(%arg0: i32) -> (i32, i32, i32) {
    %c0_i32 = arith.constant 0 : i32
    %c0_i32_0 = arith.constant 0 : i32
    %c0_i32_1 = arith.constant 0 : i32
    return %arg0, %c0_i32, %c0_i32_0 : i32, i32, i32
  }
  func.func @transform_1(%arg0: i32) -> (i32, i32) {
    %c0_i32 = arith.constant 0 : i32
    %c0_i32_0 = arith.constant 0 : i32
    %c0_i32_1 = arith.constant 0 : i32
    return %c0_i32, %c0_i32_0 : i32, i32
  }
  func.func @transform_2(%arg0: i32) -> (i32, i32) {
    %c0_i32 = arith.constant 0 : i32
    %c0_i32_0 = arith.constant 0 : i32
    %c0_i32_1 = arith.constant 0 : i32
    return %c0_i32, %c0_i32_0 : i32, i32
  }
  func.func @transform_3(%arg0: i32) -> (i32, i32) {
    %c0_i32 = arith.constant 0 : i32
    %c0_i32_0 = arith.constant 0 : i32
    %c0_i32_1 = arith.constant 0 : i32
    return %c0_i32, %c0_i32_0 : i32, i32
  }
  func.func @transform_4(%arg0: i32) -> (i32, i32, i32) {
    %c0_i32 = arith.constant 0 : i32
    %c0_i32_0 = arith.constant 0 : i32
    %c0_i32_1 = arith.constant 0 : i32
    return %arg0, %c0_i32, %c0_i32_0 : i32, i32, i32
  }
}

</mosaic_0001>

<llo_original>
// kernel: tpu_custom_call.1
$region0: #{tpu_custom_call.1}
  #allocation0 [shape = 'u32[]', space=smem, size = 0x4, offset = 0x4, fixed_abs, tag = 'smem constant byte address 0x4 - core index']
  #allocation1 [shape = 'u32[144,128]{1,0:T(1,128)}', space=vmem, size = 0x12000, scoped, tag = 'internal scratch']
  %s0 = inlined_call_operand.hbm [shape: f32[2,8,256], index: 0, kind: input, shape index: {}, may-alias: {0,4}]
  %s1 = inlined_call_operand.vmem [shape: f32[8,1], index: 1, kind: input, shape index: {}]
  %s2 = inlined_call_operand.vmem [shape: f32[8,1], index: 2, kind: input, shape index: {}]
  %s3 = inlined_call_operand.vmem [shape: f32[8,1], index: 3, kind: input, shape index: {}]
  %s4 = inlined_call_operand.hbm [shape: f32[2,8,256], index: 4, kind: output, shape index: {}, may-alias: {0,4}]
  %s5 = sld [smem:[#allocation0]]
  $region53: #{tpu_custom_call.1} parent=0
    _
  %s7 = ssub.s32 1, %s5
  %s8 = scalar_select 0, %s7, %s5
  $region1: #{tpu_custom_call.1} parent=0
    #allocation2 [shape = 'u8[16384]{0}', space=vmem, size = 0x4000, scoped, tag = 'input window, operand 0']
    #allocation3 [shape = 's32[2]{0}', space=sflag, size = 0x8, scoped, tag = 'scoped memory for tpu_custom_call.1']
    #allocation4 [shape = 's32[2]{0}', space=sflag, size = 0x8, scoped, tag = 'scoped memory for tpu_custom_call.1']
    #allocation5 [shape = 'u8[16384]{0}', space=vmem, size = 0x4000, scoped, tag = 'output window, operand 0']
    %9 = vsyncpa [#allocation3], 0
    %s10 = scalar_lea.sflag [#allocation3], 1
    %11 = vsyncpa %s10, 0
    %12 = vsyncpa [#allocation4], 0
    %s13 = scalar_lea.sflag [#allocation4], 1
    %14 = vsyncpa %s13, 0
    loop: start=0, step=1, limit=4
    $region2: #{tpu_custom_call.1} parent=1 // loop_pre_header
      _
    $region3: #{tpu_custom_call.1} parent=1 // loop_header
      %s16 = sphi 0, %s20
      %p17 = scmp.ge.s32.totalorder %s16, 4
      %s26 = sphi 0, %s28
      %s29 = sphi 0, %s26
      %s30 = sphi 0, %s29
      %s46 = sphi 0, %s30
      %s50 = sphi 0, %s50
      %s52 = sphi 0, %s50
      %s53 = sphi 0, %s52
      %s67 = sphi 0, %s53
      %s71 = sphi 0, %s71
      %s73 = sphi 0, %s71
      %s74 = sphi 0, %s73
      %s88 = sphi 0, %s74
      %s92 = sphi 0, %s92
      %s94 = sphi 0, %s92
      %s95 = sphi 0, %s94
      %s109 = sphi 0, %s95
      %s115 = sphi 0, %s117
      %s118 = sphi 0, %s115
      %s119 = sphi 0, %s118
      %s135 = sphi 0, %s119
    $region4: #{tpu_custom_call.1} parent=1 // loop_header_branch
      %19 = sbr.rel (%p17) target = $region8
    $region5: #{tpu_custom_call.1} parent=1 // loop_body
      %s21 = ssub.s32 %s16, 1
      %s22 = ssub.s32 %s16, 2
      %s23 = sadd.s32 %s16, 1
      %s24 = ssub.s32 %s16, %s23
      %p25 = scmp.eq.s32.totalorder %s24, 0
      %s27 = sadd.s32 %s26, 1
      %s28 = scalar_select %p25, %s26, %s27
      %p31 = pneg %p25
      %p32 = scmp.eq.s32.totalorder %s16, 1
      %p33 = por %p31, %p32
      %p34 = scmp.ne.s32.totalorder %s26, %s29
      %p35 = scmp.eq.s32.totalorder %s16, 0
      %p36 = por %p34, %p35
      %p37 = scmp.ne.s32.totalorder %s26, %s29
      %p38 = scmp.eq.s32.totalorder %s21, 1
      %p39 = por %p37, %p38
      %p40 = scmp.ne.s32.totalorder %s29, %s30
      %p41 = scmp.eq.s32.totalorder %s21, 0
      %p42 = por %p40, %p41
      %p43 = scmp.ne.s32.totalorder %s29, %s30
      %p44 = scmp.eq.s32.totalorder %s22, 1
      %p45 = por %p43, %p44
      %p47 = scmp.ne.s32.totalorder %s30, %s46
      %p48 = scmp.eq.s32.totalorder %s22, 0
      %p49 = por %p47, %p48
      %s51 = sadd.s32 %s50, 1
      %p54 = scmp.eq.s32.totalorder %s16, 1
      %p55 = scmp.ne.s32.totalorder %s50, %s52
      %p56 = scmp.eq.s32.totalorder %s16, 0
      %p57 = por %p55, %p56
      %p58 = scmp.ne.s32.totalorder %s50, %s52
      %p59 = scmp.eq.s32.totalorder %s21, 1
      %p60 = por %p58, %p59
      %p61 = scmp.ne.s32.totalorder %s52, %s53
      %p62 = scmp.eq.s32.totalorder %s21, 0
      %p63 = por %p61, %p62
      %p64 = scmp.ne.s32.totalorder %s52, %s53
      %p65 = scmp.eq.s32.totalorder %s22, 1
      %p66 = por %p64, %p65
      %p68 = scmp.ne.s32.totalorder %s53, %s67
      %p69 = scmp.eq.s32.totalorder %s22, 0
      %p70 = por %p68, %p69
      %s72 = sadd.s32 %s71, 1
      %p75 = scmp.eq.s32.totalorder %s16, 1
      %p76 = scmp.ne.s32.totalorder %s71, %s73
      %p77 = scmp.eq.s32.totalorder %s16, 0
      %p78 = por %p76, %p77
      %p79 = scmp.ne.s32.totalorder %s71, %s73
      %p80 = scmp.eq.s32.totalorder %s21, 1
      %p81 = por %p79, %p80
      %p82 = scmp.ne.s32.totalorder %s73, %s74
      %p83 = scmp.eq.s32.totalorder %s21, 0
      %p84 = por %p82, %p83
      %p85 = scmp.ne.s32.totalorder %s73, %s74
      %p86 = scmp.eq.s32.totalorder %s22, 1
      %p87 = por %p85, %p86
      %p89 = scmp.ne.s32.totalorder %s74, %s88
      %p90 = scmp.eq.s32.totalorder %s22, 0
      %p91 = por %p89, %p90
      %s93 = sadd.s32 %s92, 1
      %p96 = scmp.eq.s32.totalorder %s16, 1
      %p97 = scmp.ne.s32.totalorder %s92, %s94
      %p98 = scmp.eq.s32.totalorder %s16, 0
      %p99 = por %p97, %p98
      %p100 = scmp.ne.s32.totalorder %s92, %s94
      %p101 = scmp.eq.s32.totalorder %s21, 1
      %p102 = por %p100, %p101
      %p103 = scmp.ne.s32.totalorder %s94, %s95
      %p104 = scmp.eq.s32.totalorder %s21, 0
      %p105 = por %p103, %p104
      %p106 = scmp.ne.s32.totalorder %s94, %s95
      %p107 = scmp.eq.s32.totalorder %s22, 1
      %p108 = por %p106, %p107
      %p110 = scmp.ne.s32.totalorder %s95, %s109
      %p111 = scmp.eq.s32.totalorder %s22, 0
      %p112 = por %p110, %p111
      %s113 = ssub.s32 %s16, %s23
      %p114 = scmp.eq.s32.totalorder %s113, 0
      %s116 = sadd.s32 %s115, 1
      %s117 = scalar_select %p114, %s115, %s116
      %p120 = pneg %p114
      %p121 = scmp.eq.s32.totalorder %s16, 1
      %p122 = por %p120, %p121
      %p123 = scmp.ne.s32.totalorder %s115, %s118
      %p124 = scmp.eq.s32.totalorder %s16, 0
      %p125 = por %p123, %p124
      %p126 = scmp.ne.s32.totalorder %s115, %s118
      %p127 = scmp.eq.s32.totalorder %s21, 1
      %p128 = por %p126, %p127
      %p129 = scmp.ne.s32.totalorder %s118, %s119
      %p130 = scmp.eq.s32.totalorder %s21, 0
      %p131 = por %p129, %p130
      %p132 = scmp.ne.s32.totalorder %s118, %s119
      %p133 = scmp.eq.s32.totalorder %s22, 1
      %p134 = por %p132, %p133
      %p136 = scmp.ne.s32.totalorder %s119, %s135
      %p137 = scmp.eq.s32.totalorder %s22, 0
      %p138 = por %p136, %p137
      %p139 = scmp.le.s32.totalorder 1, %s16
      %p140 = scmp.lt.s32.totalorder %s16, 3
      %p141 = pnand %p139, %p140
      %p142 = pneg %p141
      // Predicated region
      $region9: #{tpu_custom_call.1} parent=5 // pred_check
        _
      $region10: #{tpu_custom_call.1} parent=5 // pred_check_branch
        %144 = sbr.rel (%p141) target = $region12
      $region11: #{tpu_custom_call.1} parent=5 // pred_region
        %s145 = ssub.s32 %s16, 1
        // Predicated region
        $region13: #{tpu_custom_call.1} parent=11 // pred_check
          %p146 = pneg %p63
        $region14: #{tpu_custom_call.1} parent=11 // pred_check_branch
          %148 = sbr.rel (%p146) target = $region16
        $region15: #{tpu_custom_call.1} parent=11 // pred_region
          _
        $region16: #{tpu_custom_call.1} parent=11 // pred_fallthru
          _
        // Predicated region
        $region17: #{tpu_custom_call.1} parent=11 // pred_check
          %p149 = pneg %p84
        $region18: #{tpu_custom_call.1} parent=11 // pred_check_branch
          %151 = sbr.rel (%p149) target = $region20
        $region19: #{tpu_custom_call.1} parent=11 // pred_region
          _
        $region20: #{tpu_custom_call.1} parent=11 // pred_fallthru
          _
        // Predicated region
        $region21: #{tpu_custom_call.1} parent=11 // pred_check
          %p152 = pneg %p105
        $region22: #{tpu_custom_call.1} parent=11 // pred_check_branch
          %154 = sbr.rel (%p152) target = $region24
        $region23: #{tpu_custom_call.1} parent=11 // pred_region
          _
        $region24: #{tpu_custom_call.1} parent=11 // pred_fallthru
          _
      $region12: #{tpu_custom_call.1} parent=5 // pred_fallthru
        _
      %p155 = scmp.lt.s32.totalorder %s16, 2
      // Predicated region
      $region25: #{tpu_custom_call.1} parent=5 // pred_check
        %p156 = pneg %p155
      $region26: #{tpu_custom_call.1} parent=5 // pred_check_branch
        %158 = sbr.rel (%p156) target = $region28
      $region27: #{tpu_custom_call.1} parent=5 // pred_region
        // Predicated region
        $region29: #{tpu_custom_call.1} parent=27 // pred_check
          %p159 = pneg %p36
        $region30: #{tpu_custom_call.1} parent=27 // pred_check_branch
          %161 = sbr.rel (%p159) target = $region32
        $region31: #{tpu_custom_call.1} parent=27 // pred_region
          %s162 = sand.u32 %s26, 1
          %s163 = scalar_lea.sflag [#allocation3], %s162
          %s164 = sand.u32 %s26, 1
          %s165 = smul.addr %s164, 16
          %s166 = scalar_lea.vmem [#allocation2], %s165
          %s168 = ssub.s32 256, 256
          %169 = vsyncadd %s163, %s168
          %s170 = smul.addr %s16, 2
          %s171 = smul.addr %s170, 128
          %s172 = scalar_lea.hbm %s0, %s171
          %s174 = sshll.u32 %s166, 4
          %s175 = int_to_ptr.vmem [resolvable:$true] %s174
          %177 = dma.hbm_to_vmem [thread:$0]  %s172, 256, %s175, %s163
        $region32: #{tpu_custom_call.1} parent=27 // pred_fallthru
          _
      $region28: #{tpu_custom_call.1} parent=5 // pred_fallthru
        _
      %p178 = scmp.le.s32.totalorder 1, %s16
      %p179 = scmp.lt.s32.totalorder %s16, 3
      %p180 = pnand %p178, %p179
      %p181 = pneg %p180
      // Predicated region
      $region33: #{tpu_custom_call.1} parent=5 // pred_check
        _
      $region34: #{tpu_custom_call.1} parent=5 // pred_check_branch
        %183 = sbr.rel (%p180) target = $region36
      $region35: #{tpu_custom_call.1} parent=5 // pred_region
        %s184 = ssub.s32 %s16, 1
        %s185 = sand.u32 %s29, 1
        %s186 = scalar_lea.sflag [#allocation3], %s185
        %s187 = sand.u32 %s29, 1
        %s188 = smul.addr %s187, 16
        %s189 = scalar_lea.vmem [#allocation2], %s188
        // Predicated region
        $region37: #{tpu_custom_call.1} parent=35 // pred_check
          %p190 = pneg %p42
        $region38: #{tpu_custom_call.1} parent=35 // pred_check_branch
          %192 = sbr.rel (%p190) target = $region40
        $region39: #{tpu_custom_call.1} parent=35 // pred_region
          %193 = dma.done %s186, 256
        $region40: #{tpu_custom_call.1} parent=35 // pred_fallthru
          _
        %s194 = sand.u32 %s29, 1
        %s195 = scalar_lea.sflag [#allocation3], %s194
        %s196 = sand.u32 %s29, 1
        %s197 = smul.addr %s196, 16
        %s198 = scalar_lea.vmem [#allocation2], %s197
        %p199 = pneg %p42
        %p200 = pneg %p39
        %p201 = pneg %p63
        %p202 = pneg %p60
        %p203 = pneg %p84
        %p204 = pneg %p81
        %p205 = pneg %p105
        %p206 = pneg %p102
        %p207 = pneg %p131
        %p208 = pneg %p128
        %s209 = sand.u32 %s118, 1
        %s210 = scalar_lea.sflag [#allocation4], %s209
        %s211 = sand.u32 %s118, 1
        %s212 = smul.addr %s211, 16
        %s213 = scalar_lea.vmem [#allocation5], %s212
        %v214 = vld [vmem:[%s189] sm:$0xff]
        %v215 = vld [vmem:[%s189 + $0x8] sm:$0xff]
        %v216 = vld [vmem:[%s1] sm:$0xff]
        %218 = vset.pattern.permute.xlu0 0
        %219 = vperm.xlu0 %218, %v216
        %v220 = vpop.permute.xlu0 %219
        %v222 = vmul.f32 %v220, %v214
        %v223 = vmul.f32 %v220, %v215
        %v224 = vrot.slane %v222, 4
        %v225 = vadd.f32 %v222, %v224
        %v226 = vrot.slane %v225, 2
        %v227 = vadd.f32 %v225, %v226
        %v228 = vrot.slane %v227, 1
        %v229 = vadd.f32 %v227, %v228
        %v230 = vrot.slane %v223, 4
        %v231 = vadd.f32 %v223, %v230
        %v232 = vrot.slane %v231, 2
        %v233 = vadd.f32 %v231, %v232
        %v234 = vrot.slane %v233, 1
        %v235 = vadd.f32 %v233, %v234
        %v236 = vmax.f32 %v229, %v235
        %237 = vmax.xlane.f32.xlu0 %v236
        %v238 = vpop.xlane.xlu0 %237
        %v239 = vsub.f32 %v229, %v238
        %v240 = vsub.f32 %v235, %v238
        %v241 = vmul.f32 %v239, 1.442695
        %v242 = vpow.pop %v241
        %v243 = vmul.f32 %v240, 1.442695
        %v244 = vpow.pop %v243
        %v245 = vadd.f32 %v242, %v244
        %246 = vadd.xlane.f32.xlu0 %v245
        %v247 = vpop.xlane.xlu0 %246
        %v248 = vrcp.pop %v247
        %v249 = vmul.f32 %v242, %v248
        %v250 = vmul.f32 %v244, %v248
        %v251 = vmul.f32 %v214, %v249
        %v252 = vmul.f32 %v215, %v250
        %v253 = vadd.f32 %v251, %v252
        %254 = vadd.xlane.f32.xlu0 %v253
        %v255 = vpop.xlane.xlu0 %254
        %v256 = vld [vmem:[%s2] sm:$0xff]
        %v257 = vmul.f32 %v256, %v255
        %vm258 = vcmask 7168
        %v259 = vsel %vm258, %v257, 0.0
        %v260 = vrot.slane %v259, 4
        %v261 = vadd.f32 %v259, %v260
        %v262 = vrot.slane %v261, 2
        %v263 = vadd.f32 %v261, %v262
        %v264 = vrot.slane %v263, 1
        %v265 = vadd.f32 %v263, %v264
        %vm266 = vcmp.ge.f32.partialorder %v265, 0.0
        %v267 = vmul.f32 %v265, 0.2
        %v268 = vsel %vm266, %v265, %v267
        %v269 = vld [vmem:[%s3] sm:$0xff]
        %v270 = vmul.f32 %v269, %v268
        %v271 = vxor.u32 %v270, 2147483648
        %v272 = vmul.f32 %v271, 1.442695
        %v273 = vpow.pop %v272
        %v274 = vadd.f32 %v273, 1.0
        %v275 = vrcp.pop %v274
        %v276 = vmul.f32 1.0, %v275
        %278 = vset.pattern.permute.xlu0 0
        %279 = vperm.xlu0 %278, %v276
        %v280 = vpop.permute.xlu0 %279
        %v282 = vmul.f32 %v214, %v280
        %v283 = vmul.f32 %v215, %v280
        %284 = vst [vmem:[%s213] sm:$0xff] %v282
        %285 = vst [vmem:[%s213 + $0x8] sm:$0xff] %v283
        %s286 = sand.u32 %s118, 1
        %s287 = scalar_lea.sflag [#allocation4], %s286
        %s288 = sand.u32 %s118, 1
        %s289 = smul.addr %s288, 16
        %s290 = scalar_lea.vmem [#allocation5], %s289
        // Predicated region
        $region41: #{tpu_custom_call.1} parent=35 // pred_check
          %p291 = pneg %p128
        $region42: #{tpu_custom_call.1} parent=35 // pred_check_branch
          %293 = sbr.rel (%p291) target = $region44
        $region43: #{tpu_custom_call.1} parent=35 // pred_region
          %s295 = ssub.s32 256, 256
          %296 = vsyncadd %s287, %s295
          %s297 = smul.addr %s21, 2
          %s298 = smul.addr %s297, 128
          %s299 = scalar_lea.hbm %s4, %s298
          %s301 = sshll.u32 %s290, 4
          %s302 = int_to_ptr.vmem [resolvable:$true] %s301
          %304 = dma.vmem_to_hbm [thread:$0]  %s302, 256, %s299, %s287
        $region44: #{tpu_custom_call.1} parent=35 // pred_fallthru
          _
      $region36: #{tpu_custom_call.1} parent=5 // pred_fallthru
        _
      %p305 = scmp.le.s32.totalorder 2, %s16
      // Predicated region
      $region45: #{tpu_custom_call.1} parent=5 // pred_check
        %p306 = pneg %p305
      $region46: #{tpu_custom_call.1} parent=5 // pred_check_branch
        %308 = sbr.rel (%p306) target = $region48
      $region47: #{tpu_custom_call.1} parent=5 // pred_region
        %s309 = ssub.s32 %s16, 2
        // Predicated region
        $region49: #{tpu_custom_call.1} parent=47 // pred_check
          %p310 = pneg %p134
        $region50: #{tpu_custom_call.1} parent=47 // pred_check_branch
          %312 = sbr.rel (%p310) target = $region52
        $region51: #{tpu_custom_call.1} parent=47 // pred_region
          %s313 = sand.u32 %s119, 1
          %s314 = scalar_lea.sflag [#allocation4], %s313
          %s315 = sand.u32 %s119, 1
          %s316 = smul.addr %s315, 16
          %s317 = scalar_lea.vmem [#allocation5], %s316
          %318 = dma.done %s314, 256
        $region52: #{tpu_custom_call.1} parent=47 // pred_fallthru
          _
      $region48: #{tpu_custom_call.1} parent=5 // pred_fallthru
        _
    $region6: #{tpu_custom_call.1} parent=1 // loop_footer
      %s20 = sadd.s32 1, %s16
    $region7: #{tpu_custom_call.1} parent=1 // loop_footer_branch
      %15 = sbr.rel target = $region3
    $region8: #{tpu_custom_call.1} parent=1 // loop_exit
      _
    %319 = vsyncpa [#allocation3], 1
    %s320 = scalar_lea.sflag [#allocation3], 1
    %321 = vsyncpa %s320, 1
    %322 = vsyncpa [#allocation4], 1
    %s323 = scalar_lea.sflag [#allocation4], 1
    %324 = vsyncpa %s323, 1

</llo_original>
